<compile_context>
chip_gen: v6e
topology: v6e:2x2x1
jax: 0.10.0
libtpu: 0.0.40
codegen_flags: <defaults>
</compile_context>

<pallas_src>
import functools

import jax
import jax.numpy as jnp
from jax.experimental import pallas as pl
from jax.experimental.pallas import tpu as pltpu


def _round_up(x, m):
    return ((x + m - 1) // m) * m


def _tpu_defaults():
    """(MXU M-tile, scoped-VMEM limit), queried from the chip when possible.

    Fallbacks are safe on every current generation: a 256-wide MXU M tile and a
    48 MiB scoped limit (v7x only has 64 MiB/TC, so 64 MiB would kill double
    buffering there; 128 MiB parts get a larger limit from the capacity query).
    """
    mxu_m = 256
    vmem_limit = 48 * 1024 * 1024
    try:
        info = pltpu.get_tpu_info()
        cap = getattr(info, "vmem_capacity_bytes", None)
        if cap:
            # ~25% headroom for double buffering; cap below the 128 MiB parts.
            vmem_limit = int(min(cap * 3 // 4, 100 * 1024 * 1024))
        for attr in ("mxu_column_count", "mxu_size", "matmul_tile_size"):
            v = getattr(info, attr, None)
            if v:
                mxu_m = int(v)
                break
    except Exception:
        pass
    return mxu_m, vmem_limit


def _fcn_head_fused_kernel(x_ref, wf_ref, b_ref, out_ref, acc_ref, *, Wp):
    """Fully fused conv3x3 . BN . conv1x1: wf[t] = (scale*W2) @ W1[t], b = W2@bn_b + b2.

    Every tap matmul runs over the full, lane-aligned tile width (no operand
    slicing/shifting); the tap offset is applied as a static circular roll of the
    small (Cout_pad, S) f32 *result* before accumulating into VMEM scratch.
    """
    k = pl.program_id(2)

    @pl.when(k == 0)
    def _():
        acc_ref[...] = jnp.zeros_like(acc_ref)

    x = x_ref[0, 0]                                    # (tk, S) bf16, loaded once
    for ky in range(3):
        for kx in range(3):
            off = ky * Wp + kx
            p = jnp.dot(wf_ref[3 * ky + kx], x, preferred_element_type=jnp.float32)
            if off:
                p = jnp.roll(p, -off, axis=1)          # shift the small result rows
            acc_ref[...] += p                          # per-tap accumulate into VMEM

    @pl.when(k == pl.num_programs(2) - 1)
    def _():
        y = acc_ref[...] + b_ref[...]                  # (Cout_pad, S) + (Cout_pad, 1)
        out_ref[...] = y.reshape(out_ref.shape).astype(out_ref.dtype)


def _fcn_head_two_stage_kernel(x_ref, w1_ref, w2_ref, b_ref, out_ref,
                               part_ref, acc_ref, *, Wp):
    """Per-Cin-block conv3x3 partial + BN-folded 1x1 into a (Cout_pad, S) accumulator.

    Cinter is typically >= the Cin block, so here the bf16 operand is the smaller
    object to move: the tap offset is a static circular roll of the operand.  Only
    a small (Cout_pad, S) accumulator persists across the Cin reduction.
    """
    k = pl.program_id(2)

    @pl.when(k == 0)
    def _():
        acc_ref[...] = jnp.zeros_like(acc_ref)

    x = x_ref[0, 0]                                    # (tk, S) bf16, loaded once
    for ky in range(3):
        for kx in range(3):
            off = ky * Wp + kx
            xt = jnp.roll(x, -off, axis=1) if off else x
            c = jnp.dot(w1_ref[3 * ky + kx], xt, preferred_element_type=jnp.float32)
            if ky == 0 and kx == 0:
                part_ref[...] = c                      # per-tap accumulate into VMEM
            else:
                part_ref[...] += c

    # BN-folded 1x1 applied per Cin block (exact by linearity).
    acc_ref[...] += jnp.dot(w2_ref[...], part_ref[...].astype(w2_ref.dtype),
                            preferred_element_type=jnp.float32)

    @pl.when(k == pl.num_programs(2) - 1)
    def _():
        y = acc_ref[...] + b_ref[...]
        out_ref[...] = y.reshape(out_ref.shape).astype(out_ref.dtype)


def fcn_head_forward(x_nchw, w1_oihw, gamma, beta, run_mean, run_var, w2_oihw, b2,
                     eps=1e-5, block_cin=None, block_h=32, force_two_stage=None):
    """Pallas-backed FCNHead forward (eval mode). Input/output are NCHW."""
    N, Cin, H, W = x_nchw.shape
    Cinter = w1_oihw.shape[0]
    Cout = w2_oihw.shape[0]
    out_dtype = x_nchw.dtype

    mxu_m, vmem_limit = _tpu_defaults()

    # ---- spatial tiling: halo'd H-row tiles, flattened + lane-padded ----------------
    Wp = W + 2
    tH = min(block_h, H)
    Hpad = _round_up(H, tH)
    nH = Hpad // tH
    S_raw = (tH + 2) * Wp
    S = _round_up(S_raw, 128)              # lane-dense blocks -> unmasked stores

    # ---- channel padding / MXU-padding-aware path choice ----------------------------
    cout_p = _round_up(Cout, 8)
    cint_p = _round_up(Cinter, 8)
    cin8 = _round_up(Cin, 8)

    nk_est = max(1, -(-cin8 // 512))
    fused_cost = 9 * cin8 * _round_up(Cout, mxu_m)
    two_stage_cost = (9 * cin8 * _round_up(Cinter, mxu_m)
                      + nk_est * Cinter * _round_up(Cout, mxu_m))
    fuse = fused_cost <= two_stage_cost
    if force_two_stage is not None:
        fuse = not force_two_stage
    cm = cout_p if fuse else cint_p

    # Cin (reduction) block: largest legal block whose double-buffered working set
    # stays within ~60% of the scoped VMEM limit.  Ragged Cin is zero padded.
    if block_cin is None:
        fixed = 3 * cout_p * S * 4 + (0 if fuse else cint_p * S * 4)
        per_tk = 2 * S * 2 + 2 * 9 * cm * 2
        tk_budget = max((int(vmem_limit * 0.6) - fixed) // per_tk, 8)
    else:
        tk_budget = block_cin
    tk = cin8 if cin8 <= tk_budget else max(128, (tk_budget // 128) * 128)
    cin_t = _round_up(cin8, tk)
    nK = cin_t // tk

    # ---- fold BatchNorm (eval) into the 1x1 conv -------------------------------------
    inv_std = (gamma / jnp.sqrt(run_var + eps)).astype(jnp.float32)
    bn_bias = beta.astype(jnp.float32) - run_mean.astype(jnp.float32) * inv_std
    w2_mat = w2_oihw.reshape(Cout, Cinter).astype(jnp.float32)
    w2_folded = w2_mat * inv_std[None, :]                        # (Cout, Cinter)
    b_folded = w2_mat @ bn_bias + b2.astype(jnp.float32)         # (Cout,)
    b_col = jnp.zeros((cout_p, 1), jnp.float32).at[:Cout, 0].set(b_folded)

    # (Cinter, Cin, 3, 3) -> (9, Cinter, Cin), tap index t = 3*ky + kx.
    w1_taps = jnp.transpose(w1_oihw.astype(jnp.float32), (2, 3, 0, 1)).reshape(9, Cinter, Cin)

    # ---- activations: zero halo, halo'd H tiles, bf16, lane-padded --------------------
    # TODO(synk): the padded/halo'd bf16 activation copy is still materialized by the
    # wrapper (one extra HBM pass); removing it needs in-kernel halo DMA with
    # element-offset index maps.
    x_p = jnp.pad(x_nchw, ((0, 0), (0, cin_t - Cin), (1, 1 + Hpad - H), (1, 1)))
    x_p = x_p.astype(jnp.bfloat16)                               # (N, cin_t, Hpad+2, Wp)
    x_t = jnp.stack([x_p[:, :, h * tH:h * tH + tH + 2, :] for h in range(nH)], axis=1)
    x_flat = x_t.reshape(N, nH, cin_t, S_raw)
    x_flat = jnp.pad(x_flat, ((0, 0), (0, 0), (0, 0), (0, S - S_raw)))

    grid = (N, nH, nK)                      # batch, H-row tiles (parallel), Cin blocks
    compiler_params = pltpu.CompilerParams(
        dimension_semantics=("parallel", "parallel", "arbitrary"),
        vmem_limit_bytes=int(vmem_limit),
    )
    x_spec = pl.BlockSpec((1, 1, tk, S), lambda n, h, k: (n, h, k, 0))
    b_spec = pl.BlockSpec((cout_p, 1), lambda n, h, k: (0, 0))
    out_spec = pl.BlockSpec((1, 1, cout_p, S), lambda n, h, k: (n, h, 0, 0))
    out_shape = jax.ShapeDtypeStruct((N, nH, cout_p, S), out_dtype)

    if fuse:
        wf = jnp.einsum("oc,tci->toi", w2_folded, w1_taps)       # (9, Cout, Cin)
        wf = (jnp.zeros((9, cout_p, cin_t), jnp.float32)
              .at[:, :Cout, :Cin].set(wf).astype(jnp.bfloat16))
        out_flat = pl.pallas_call(
            functools.partial(_fcn_head_fused_kernel, Wp=Wp),
            out_shape=out_shape,
            grid=grid,
            in_specs=[x_spec,
                      pl.BlockSpec((9, cout_p, tk), lambda n, h, k: (0, 0, k)),
                      b_spec],
            out_specs=out_spec,
            scratch_shapes=[pltpu.VMEM((cout_p, S), jnp.float32)],
            compiler_params=compiler_params,
        )(x_flat, wf, b_col)
    else:
        w1p = (jnp.zeros((9, cint_p, cin_t), jnp.float32)
               .at[:, :Cinter, :Cin].set(w1_taps).astype(jnp.bfloat16))
        w2p = (jnp.zeros((cout_p, cint_p), jnp.float32)
               .at[:Cout, :Cinter].set(w2_folded).astype(jnp.bfloat16))
        out_flat = pl.pallas_call(
            functools.partial(_fcn_head_two_stage_kernel, Wp=Wp),
            out_shape=out_shape,
            grid=grid,
            in_specs=[x_spec,
                      pl.BlockSpec((9, cint_p, tk), lambda n, h, k: (0, 0, k)),
                      pl.BlockSpec((cout_p, cint_p), lambda n, h, k: (0, 0)),
                      b_spec],
            out_specs=out_spec,
            scratch_shapes=[pltpu.VMEM((cint_p, S), jnp.float32),
                            pltpu.VMEM((cout_p, S), jnp.float32)],
            compiler_params=compiler_params,
        )(x_flat, w1p, w2p, b_col)

    # Drop channel/lane padding and halo over-compute; reassemble NCHW.
    out = out_flat[:, :, :Cout, :tH * Wp].reshape(N, nH, Cout, tH, Wp)[..., :W]
    out = jnp.transpose(out, (0, 2, 1, 3, 4)).reshape(N, Cout, Hpad, W)
    return out[:, :, :H, :]


def reference_forward(x, w1, gamma, beta, run_mean, run_var, w2, b2, eps=1e-5):
    """Pure-JAX f32 reference (NCHW), matching PyTorch eval-mode semantics."""
    y = jax.lax.conv_general_dilated(
        x, w1, window_strides=(1, 1), padding=((1, 1), (1, 1)),
        dimension_numbers=("NCHW", "OIHW", "NCHW"))
    inv_std = gamma / jnp.sqrt(run_var + eps)
    y = y * inv_std[None, :, None, None] + (beta - run_mean * inv_std)[None, :, None, None]
    y = jax.lax.conv_general_dilated(
        y, w2, window_strides=(1, 1), padding=((0, 0), (0, 0)),
        dimension_numbers=("NCHW", "OIHW", "NCHW"))
    return y + b2[None, :, None, None]


if __name__ == "__main__":
    def run_case(key, N, Cin, channel_stride, Cout, H, W, **kwargs):
        Cinter = Cin // channel_stride
        k = jax.random.split(key, 8)
        x = jax.random.normal(k[0], (N, Cin, H, W), jnp.float32)
        w1 = jax.random.normal(k[1], (Cinter, Cin, 3, 3), jnp.float32) * 0.1  # no bias
        gamma = jax.random.uniform(k[2], (Cinter,), jnp.float32, 0.5, 1.5)
        beta = jax.random.normal(k[3], (Cinter,), jnp.float32) * 0.1
        run_mean = jax.random.normal(k[4], (Cinter,), jnp.float32) * 0.1
        run_var = jax.random.uniform(k[5], (Cinter,), jnp.float32, 0.5, 1.5)
        w2 = jax.random.normal(k[6], (Cout, Cinter, 1, 1), jnp.float32) * 0.1
        b2 = jax.random.normal(k[7], (Cout,), jnp.float32) * 0.1

        fwd = jax.jit(functools.partial(fcn_head_forward, **kwargs))
        out = jax.block_until_ready(fwd(x, w1, gamma, beta, run_mean, run_var, w2, b2))
        ref = reference_forward(x, w1, gamma, beta, run_mean, run_var, w2, b2)
        assert out.shape == (N, Cout, H, W), out.shape
        # bf16 MXU inputs with f32 accumulation -> compare against an f32 reference
        # with a scale-aware tolerance.
        err = float(jnp.max(jnp.abs(out - ref)))
        scale = float(jnp.max(jnp.abs(ref))) + 1e-6
        assert err <= 0.02 * scale + 0.02, (err, scale)

    # TODO(synk): Dropout2d is identity in eval mode (what this kernel implements);
    # training-mode per-channel dropout is not reproduced.
    key = jax.random.PRNGKey(0)
    k1, k2, k3 = jax.random.split(key, 3)
    # Fused path (heuristic) with 2 parallel spatial row tiles.
    run_case(k1, N=2, Cin=8, channel_stride=2, Cout=5, H=16, W=16, block_h=8)
    # Two-stage path, single Cin block.
    run_case(k2, N=2, Cin=32, channel_stride=1, Cout=5, H=16, W=16,
             force_two_stage=True)
    # Two-stage path with a tiled Cin reduction (2 blocks), batch=1, 2 row tiles.
    run_case(k3, N=1, Cin=256, channel_stride=4, Cout=5, H=16, W=16,
             block_cin=128, block_h=8, force_two_stage=True)

    print("KERNEL_OK")
</pallas_src>

<mosaic_0001>
module attributes {stable_mosaic.version = 11 : i64} {
  func.func @_fcn_head_fused_kernel(%arg0: i32, %arg1: i32, %arg2: i32, %arg3: memref<1x1x8x256xbf16, #tpu.memory_space<vmem>>, %arg4: memref<9x8x8xbf16, #tpu.memory_space<vmem>>, %arg5: memref<8x1xf32, #tpu.memory_space<vmem>>, %arg6: memref<1x1x8x256xf32, #tpu.memory_space<vmem>>, %arg7: memref<8x256xf32, #tpu.memory_space<vmem>>) attributes {dimension_semantics = [#tpu.dimension_semantics<parallel>, #tpu.dimension_semantics<parallel>, #tpu.dimension_semantics<arbitrary>], iteration_bounds = array<i64: 2, 2, 1>, scalar_prefetch = 0 : i64, scratch_operands = 1 : i64, tpu.core_type = #tpu.core_type<tc>, window_params = [{transform_indices = @transform_0, window_bounds = array<i64: 1, 1, 8, 256>}, {transform_indices = @transform_1, window_bounds = array<i64: 9, 8, 8>}, {pipeline_mode = #tpu.pipeline_mode<synchronous>, transform_indices = @transform_2, window_bounds = array<i64: 8, 1>}, {transform_indices = @transform_3, window_bounds = array<i64: 1, 1, 8, 256>}]} {
    %c0_i32 = arith.constant 0 : i32
    %0 = arith.cmpi eq, %arg2, %c0_i32 : i32
    %1 = arith.extui %0 : i1 to i32
    %c0_i32_0 = arith.constant 0 : i32
    %2 = arith.cmpi ne, %1, %c0_i32_0 : i32
    scf.if %2 {
      %cst_69 = arith.constant 0.000000e+00 : f32
      %86 = vector.broadcast %cst_69 : f32 to vector<8x256xf32>
      %c0_70 = arith.constant 0 : index
      %c0_71 = arith.constant 0 : index
      %87 = vector.load %arg7[%c0_70, %c0_71] : memref<8x256xf32, #tpu.memory_space<vmem>>, vector<8x256xf32>
      tpu.vector_store %arg7[%c0_70, %c0_71], %86 {strides = array<i32>} : memref<8x256xf32, #tpu.memory_space<vmem>>, vector<8x256xf32>,
    } else {
    }
    %c0 = arith.constant 0 : index
    %c0_1 = arith.constant 0 : index
    %c0_2 = arith.constant 0 : index
    %c0_3 = arith.constant 0 : index
    %3 = vector.load %arg3[%c0, %c0_1, %c0_2, %c0_3] : memref<1x1x8x256xbf16, #tpu.memory_space<vmem>>, vector<1x1x8x256xbf16>
    %4 = vector.shape_cast %3 : vector<1x1x8x256xbf16> to vector<8x256xbf16>
    %c0_4 = arith.constant 0 : index
    %c0_5 = arith.constant 0 : index
    %c0_6 = arith.constant 0 : index
    %5 = vector.load %arg4[%c0_4, %c0_5, %c0_6] : memref<9x8x8xbf16, #tpu.memory_space<vmem>>, vector<1x8x8xbf16>
    %6 = vector.shape_cast %5 : vector<1x8x8xbf16> to vector<8x8xbf16>
    %cst = arith.constant dense<0.000000e+00> : vector<8x256xf32>
    %7 = tpu.matmul %6, %4, %cst {dimension_numbers = #tpu.dot_dimension_numbers<[1], [0], [0], [1], [0, 0, 1, 1], [], []>} : vector<8x8xbf16>, vector<8x256xbf16>, vector<8x256xf32> -> vector<8x256xf32>
    %c0_7 = arith.constant 0 : index
    %c0_8 = arith.constant 0 : index
    %8 = vector.load %arg7[%c0_7, %c0_8] : memref<8x256xf32, #tpu.memory_space<vmem>>, vector<8x256xf32>
    %9 = arith.addf %8, %7 : vector<8x256xf32>
    %c0_9 = arith.constant 0 : index
    %c0_10 = arith.constant 0 : index
    %10 = vector.load %arg7[%c0_9, %c0_10] : memref<8x256xf32, #tpu.memory_space<vmem>>, vector<8x256xf32>
    tpu.vector_store %arg7[%c0_9, %c0_10], %9 {strides = array<i32>} : memref<8x256xf32, #tpu.memory_space<vmem>>, vector<8x256xf32>,
    %c1 = arith.constant 1 : index
    %c0_11 = arith.constant 0 : index
    %c0_12 = arith.constant 0 : index
    %11 = vector.load %arg4[%c1, %c0_11, %c0_12] : memref<9x8x8xbf16, #tpu.memory_space<vmem>>, vector<1x8x8xbf16>
    %12 = vector.shape_cast %11 : vector<1x8x8xbf16> to vector<8x8xbf16>
    %cst_13 = arith.constant dense<0.000000e+00> : vector<8x256xf32>
    %13 = tpu.matmul %12, %4, %cst_13 {dimension_numbers = #tpu.dot_dimension_numbers<[1], [0], [0], [1], [0, 0, 1, 1], [], []>} : vector<8x8xbf16>, vector<8x256xbf16>, vector<8x256xf32> -> vector<8x256xf32>
    %14 = vector.extract_strided_slice %13 {offsets = [0, 1], sizes = [8, 255], strides = [1, 1]} : vector<8x256xf32> to vector<8x255xf32>
    %15 = vector.extract_strided_slice %13 {offsets = [0, 0], sizes = [8, 1], strides = [1, 1]} : vector<8x256xf32> to vector<8x1xf32>
    %16 = tpu.concatenate %14, %15 in 1 : vector<8x255xf32>, vector<8x1xf32> -> vector<8x256xf32>
    %c0_14 = arith.constant 0 : index
    %c0_15 = arith.constant 0 : index
    %17 = vector.load %arg7[%c0_14, %c0_15] : memref<8x256xf32, #tpu.memory_space<vmem>>, vector<8x256xf32>
    %18 = arith.addf %17, %16 : vector<8x256xf32>
    %c0_16 = arith.constant 0 : index
    %c0_17 = arith.constant 0 : index
    %19 = vector.load %arg7[%c0_16, %c0_17] : memref<8x256xf32, #tpu.memory_space<vmem>>, vector<8x256xf32>
    tpu.vector_store %arg7[%c0_16, %c0_17], %18 {strides = array<i32>} : memref<8x256xf32, #tpu.memory_space<vmem>>, vector<8x256xf32>,
    %c2 = arith.constant 2 : index
    %c0_18 = arith.constant 0 : index
    %c0_19 = arith.constant 0 : index
    %20 = vector.load %arg4[%c2, %c0_18, %c0_19] : memref<9x8x8xbf16, #tpu.memory_space<vmem>>, vector<1x8x8xbf16>
    %21 = vector.shape_cast %20 : vector<1x8x8xbf16> to vector<8x8xbf16>
    %cst_20 = arith.constant dense<0.000000e+00> : vector<8x256xf32>
    %22 = tpu.matmul %21, %4, %cst_20 {dimension_numbers = #tpu.dot_dimension_numbers<[1], [0], [0], [1], [0, 0, 1, 1], [], []>} : vector<8x8xbf16>, vector<8x256xbf16>, vector<8x256xf32> -> vector<8x256xf32>
    %23 = vector.extract_strided_slice %22 {offsets = [0, 2], sizes = [8, 254], strides = [1, 1]} : vector<8x256xf32> to vector<8x254xf32>
    %24 = vector.extract_strided_slice %22 {offsets = [0, 0], sizes = [8, 2], strides = [1, 1]} : vector<8x256xf32> to vector<8x2xf32>
    %25 = tpu.concatenate %23, %24 in 1 : vector<8x254xf32>, vector<8x2xf32> -> vector<8x256xf32>
    %c0_21 = arith.constant 0 : index
    %c0_22 = arith.constant 0 : index
    %26 = vector.load %arg7[%c0_21, %c0_22] : memref<8x256xf32, #tpu.memory_space<vmem>>, vector<8x256xf32>
    %27 = arith.addf %26, %25 : vector<8x256xf32>
    %c0_23 = arith.constant 0 : index
    %c0_24 = arith.constant 0 : index
    %28 = vector.load %arg7[%c0_23, %c0_24] : memref<8x256xf32, #tpu.memory_space<vmem>>, vector<8x256xf32>
    tpu.vector_store %arg7[%c0_23, %c0_24], %27 {strides = array<i32>} : memref<8x256xf32, #tpu.memory_space<vmem>>, vector<8x256xf32>,
    %c3 = arith.constant 3 : index
    %c0_25 = arith.constant 0 : index
    %c0_26 = arith.constant 0 : index
    %29 = vector.load %arg4[%c3, %c0_25, %c0_26] : memref<9x8x8xbf16, #tpu.memory_space<vmem>>, vector<1x8x8xbf16>
    %30 = vector.shape_cast %29 : vector<1x8x8xbf16> to vector<8x8xbf16>
    %cst_27 = arith.constant dense<0.000000e+00> : vector<8x256xf32>
    %31 = tpu.matmul %30, %4, %cst_27 {dimension_numbers = #tpu.dot_dimension_numbers<[1], [0], [0], [1], [0, 0, 1, 1], [], []>} : vector<8x8xbf16>, vector<8x256xbf16>, vector<8x256xf32> -> vector<8x256xf32>
    %32 = vector.extract_strided_slice %31 {offsets = [0, 18], sizes = [8, 238], strides = [1, 1]} : vector<8x256xf32> to vector<8x238xf32>
    %33 = vector.extract_strided_slice %31 {offsets = [0, 0], sizes = [8, 18], strides = [1, 1]} : vector<8x256xf32> to vector<8x18xf32>
    %34 = tpu.concatenate %32, %33 in 1 : vector<8x238xf32>, vector<8x18xf32> -> vector<8x256xf32>
    %c0_28 = arith.constant 0 : index
    %c0_29 = arith.constant 0 : index
    %35 = vector.load %arg7[%c0_28, %c0_29] : memref<8x256xf32, #tpu.memory_space<vmem>>, vector<8x256xf32>
    %36 = arith.addf %35, %34 : vector<8x256xf32>
    %c0_30 = arith.constant 0 : index
    %c0_31 = arith.constant 0 : index
    %37 = vector.load %arg7[%c0_30, %c0_31] : memref<8x256xf32, #tpu.memory_space<vmem>>, vector<8x256xf32>
    tpu.vector_store %arg7[%c0_30, %c0_31], %36 {strides = array<i32>} : memref<8x256xf32, #tpu.memory_space<vmem>>, vector<8x256xf32>,
    %c4 = arith.constant 4 : index
    %c0_32 = arith.constant 0 : index
    %c0_33 = arith.constant 0 : index
    %38 = vector.load %arg4[%c4, %c0_32, %c0_33] : memref<9x8x8xbf16, #tpu.memory_space<vmem>>, vector<1x8x8xbf16>
    %39 = vector.shape_cast %38 : vector<1x8x8xbf16> to vector<8x8xbf16>
    %cst_34 = arith.constant dense<0.000000e+00> : vector<8x256xf32>
    %40 = tpu.matmul %39, %4, %cst_34 {dimension_numbers = #tpu.dot_dimension_numbers<[1], [0], [0], [1], [0, 0, 1, 1], [], []>} : vector<8x8xbf16>, vector<8x256xbf16>, vector<8x256xf32> -> vector<8x256xf32>
    %41 = vector.extract_strided_slice %40 {offsets = [0, 19], sizes = [8, 237], strides = [1, 1]} : vector<8x256xf32> to vector<8x237xf32>
    %42 = vector.extract_strided_slice %40 {offsets = [0, 0], sizes = [8, 19], strides = [1, 1]} : vector<8x256xf32> to vector<8x19xf32>
    %43 = tpu.concatenate %41, %42 in 1 : vector<8x237xf32>, vector<8x19xf32> -> vector<8x256xf32>
    %c0_35 = arith.constant 0 : index
    %c0_36 = arith.constant 0 : index
    %44 = vector.load %arg7[%c0_35, %c0_36] : memref<8x256xf32, #tpu.memory_space<vmem>>, vector<8x256xf32>
    %45 = arith.addf %44, %43 : vector<8x256xf32>
    %c0_37 = arith.constant 0 : index
    %c0_38 = arith.constant 0 : index
    %46 = vector.load %arg7[%c0_37, %c0_38] : memref<8x256xf32, #tpu.memory_space<vmem>>, vector<8x256xf32>
    tpu.vector_store %arg7[%c0_37, %c0_38], %45 {strides = array<i32>} : memref<8x256xf32, #tpu.memory_space<vmem>>, vector<8x256xf32>,
    %c5 = arith.constant 5 : index
    %c0_39 = arith.constant 0 : index
    %c0_40 = arith.constant 0 : index
    %47 = vector.load %arg4[%c5, %c0_39, %c0_40] : memref<9x8x8xbf16, #tpu.memory_space<vmem>>, vector<1x8x8xbf16>
    %48 = vector.shape_cast %47 : vector<1x8x8xbf16> to vector<8x8xbf16>
    %cst_41 = arith.constant dense<0.000000e+00> : vector<8x256xf32>
    %49 = tpu.matmul %48, %4, %cst_41 {dimension_numbers = #tpu.dot_dimension_numbers<[1], [0], [0], [1], [0, 0, 1, 1], [], []>} : vector<8x8xbf16>, vector<8x256xbf16>, vector<8x256xf32> -> vector<8x256xf32>
    %50 = vector.extract_strided_slice %49 {offsets = [0, 20], sizes = [8, 236], strides = [1, 1]} : vector<8x256xf32> to vector<8x236xf32>
    %51 = vector.extract_strided_slice %49 {offsets = [0, 0], sizes = [8, 20], strides = [1, 1]} : vector<8x256xf32> to vector<8x20xf32>
    %52 = tpu.concatenate %50, %51 in 1 : vector<8x236xf32>, vector<8x20xf32> -> vector<8x256xf32>
    %c0_42 = arith.constant 0 : index
    %c0_43 = arith.constant 0 : index
    %53 = vector.load %arg7[%c0_42, %c0_43] : memref<8x256xf32, #tpu.memory_space<vmem>>, vector<8x256xf32>
    %54 = arith.addf %53, %52 : vector<8x256xf32>
    %c0_44 = arith.constant 0 : index
    %c0_45 = arith.constant 0 : index
    %55 = vector.load %arg7[%c0_44, %c0_45] : memref<8x256xf32, #tpu.memory_space<vmem>>, vector<8x256xf32>
    tpu.vector_store %arg7[%c0_44, %c0_45], %54 {strides = array<i32>} : memref<8x256xf32, #tpu.memory_space<vmem>>, vector<8x256xf32>,
    %c6 = arith.constant 6 : index
    %c0_46 = arith.constant 0 : index
    %c0_47 = arith.constant 0 : index
    %56 = vector.load %arg4[%c6, %c0_46, %c0_47] : memref<9x8x8xbf16, #tpu.memory_space<vmem>>, vector<1x8x8xbf16>
    %57 = vector.shape_cast %56 : vector<1x8x8xbf16> to vector<8x8xbf16>
    %cst_48 = arith.constant dense<0.000000e+00> : vector<8x256xf32>
    %58 = tpu.matmul %57, %4, %cst_48 {dimension_numbers = #tpu.dot_dimension_numbers<[1], [0], [0], [1], [0, 0, 1, 1], [], []>} : vector<8x8xbf16>, vector<8x256xbf16>, vector<8x256xf32> -> vector<8x256xf32>
    %59 = vector.extract_strided_slice %58 {offsets = [0, 36], sizes = [8, 220], strides = [1, 1]} : vector<8x256xf32> to vector<8x220xf32>
    %60 = vector.extract_strided_slice %58 {offsets = [0, 0], sizes = [8, 36], strides = [1, 1]} : vector<8x256xf32> to vector<8x36xf32>
    %61 = tpu.concatenate %59, %60 in 1 : vector<8x220xf32>, vector<8x36xf32> -> vector<8x256xf32>
    %c0_49 = arith.constant 0 : index
    %c0_50 = arith.constant 0 : index
    %62 = vector.load %arg7[%c0_49, %c0_50] : memref<8x256xf32, #tpu.memory_space<vmem>>, vector<8x256xf32>
    %63 = arith.addf %62, %61 : vector<8x256xf32>
    %c0_51 = arith.constant 0 : index
    %c0_52 = arith.constant 0 : index
    %64 = vector.load %arg7[%c0_51, %c0_52] : memref<8x256xf32, #tpu.memory_space<vmem>>, vector<8x256xf32>
    tpu.vector_store %arg7[%c0_51, %c0_52], %63 {strides = array<i32>} : memref<8x256xf32, #tpu.memory_space<vmem>>, vector<8x256xf32>,
    %c7 = arith.constant 7 : index
    %c0_53 = arith.constant 0 : index
    %c0_54 = arith.constant 0 : index
    %65 = vector.load %arg4[%c7, %c0_53, %c0_54] : memref<9x8x8xbf16, #tpu.memory_space<vmem>>, vector<1x8x8xbf16>
    %66 = vector.shape_cast %65 : vector<1x8x8xbf16> to vector<8x8xbf16>
    %cst_55 = arith.constant dense<0.000000e+00> : vector<8x256xf32>
    %67 = tpu.matmul %66, %4, %cst_55 {dimension_numbers = #tpu.dot_dimension_numbers<[1], [0], [0], [1], [0, 0, 1, 1], [], []>} : vector<8x8xbf16>, vector<8x256xbf16>, vector<8x256xf32> -> vector<8x256xf32>
    %68 = vector.extract_strided_slice %67 {offsets = [0, 37], sizes = [8, 219], strides = [1, 1]} : vector<8x256xf32> to vector<8x219xf32>
    %69 = vector.extract_strided_slice %67 {offsets = [0, 0], sizes = [8, 37], strides = [1, 1]} : vector<8x256xf32> to vector<8x37xf32>
    %70 = tpu.concatenate %68, %69 in 1 : vector<8x219xf32>, vector<8x37xf32> -> vector<8x256xf32>
    %c0_56 = arith.constant 0 : index
    %c0_57 = arith.constant 0 : index
    %71 = vector.load %arg7[%c0_56, %c0_57] : memref<8x256xf32, #tpu.memory_space<vmem>>, vector<8x256xf32>
    %72 = arith.addf %71, %70 : vector<8x256xf32>
    %c0_58 = arith.constant 0 : index
    %c0_59 = arith.constant 0 : index
    %73 = vector.load %arg7[%c0_58, %c0_59] : memref<8x256xf32, #tpu.memory_space<vmem>>, vector<8x256xf32>
    tpu.vector_store %arg7[%c0_58, %c0_59], %72 {strides = array<i32>} : memref<8x256xf32, #tpu.memory_space<vmem>>, vector<8x256xf32>,
    %c8 = arith.constant 8 : index
    %c0_60 = arith.constant 0 : index
    %c0_61 = arith.constant 0 : index
    %74 = vector.load %arg4[%c8, %c0_60, %c0_61] : memref<9x8x8xbf16, #tpu.memory_space<vmem>>, vector<1x8x8xbf16>
    %75 = vector.shape_cast %74 : vector<1x8x8xbf16> to vector<8x8xbf16>
    %cst_62 = arith.constant dense<0.000000e+00> : vector<8x256xf32>
    %76 = tpu.matmul %75, %4, %cst_62 {dimension_numbers = #tpu.dot_dimension_numbers<[1], [0], [0], [1], [0, 0, 1, 1], [], []>} : vector<8x8xbf16>, vector<8x256xbf16>, vector<8x256xf32> -> vector<8x256xf32>
    %77 = vector.extract_strided_slice %76 {offsets = [0, 38], sizes = [8, 218], strides = [1, 1]} : vector<8x256xf32> to vector<8x218xf32>
    %78 = vector.extract_strided_slice %76 {offsets = [0, 0], sizes = [8, 38], strides = [1, 1]} : vector<8x256xf32> to vector<8x38xf32>
    %79 = tpu.concatenate %77, %78 in 1 : vector<8x218xf32>, vector<8x38xf32> -> vector<8x256xf32>
    %c0_63 = arith.constant 0 : index
    %c0_64 = arith.constant 0 : index
    %80 = vector.load %arg7[%c0_63, %c0_64] : memref<8x256xf32, #tpu.memory_space<vmem>>, vector<8x256xf32>
    %81 = arith.addf %80, %79 : vector<8x256xf32>
    %c0_65 = arith.constant 0 : index
    %c0_66 = arith.constant 0 : index
    %82 = vector.load %arg7[%c0_65, %c0_66] : memref<8x256xf32, #tpu.memory_space<vmem>>, vector<8x256xf32>
    tpu.vector_store %arg7[%c0_65, %c0_66], %81 {strides = array<i32>} : memref<8x256xf32, #tpu.memory_space<vmem>>, vector<8x256xf32>,
    %c0_i32_67 = arith.constant 0 : i32
    %83 = arith.cmpi eq, %arg2, %c0_i32_67 : i32
    %84 = arith.extui %83 : i1 to i32
    %c0_i32_68 = arith.constant 0 : i32
    %85 = arith.cmpi ne, %84, %c0_i32_68 : i32
    scf.if %85 {
      %c0_69 = arith.constant 0 : index
      %c0_70 = arith.constant 0 : index
      %86 = vector.load %arg7[%c0_69, %c0_70] : memref<8x256xf32, #tpu.memory_space<vmem>>, vector<8x256xf32>
      %c0_71 = arith.constant 0 : index
      %c0_72 = arith.constant 0 : index
      %87 = vector.load %arg5[%c0_71, %c0_72] : memref<8x1xf32, #tpu.memory_space<vmem>>, vector<8x1xf32>
      %88 = vector.broadcast %87 : vector<8x1xf32> to vector<8x256xf32>
      %89 = arith.addf %86, %88 : vector<8x256xf32>
      %90 = vector.shape_cast %89 : vector<8x256xf32> to vector<1x1x8x256xf32>
      %c0_73 = arith.constant 0 : index
      %c0_74 = arith.constant 0 : index
      %c0_75 = arith.constant 0 : index
      %c0_76 = arith.constant 0 : index
      %91 = vector.load %arg6[%c0_73, %c0_74, %c0_75, %c0_76] : memref<1x1x8x256xf32, #tpu.memory_space<vmem>>, vector<1x1x8x256xf32>
      tpu.vector_store %arg6[%c0_73, %c0_74, %c0_75, %c0_76], %90 {strides = array<i32>} : memref<1x1x8x256xf32, #tpu.memory_space<vmem>>, vector<1x1x8x256xf32>,
    } else {
    }
    return
  }
  func.func @transform_0(%arg0: i32, %arg1: i32, %arg2: i32) -> (i32, i32, i32, i32) {
    %c0_i32 = arith.constant 0 : i32
    %c0_i32_0 = arith.constant 0 : i32
    return %arg0, %arg1, %arg2, %c0_i32 : i32, i32, i32, i32
  }
  func.func @transform_1(%arg0: i32, %arg1: i32, %arg2: i32) -> (i32, i32, i32) {
    %c0_i32 = arith.constant 0 : i32
    %c0_i32_0 = arith.constant 0 : i32
    %c0_i32_1 = arith.constant 0 : i32
    return %c0_i32, %c0_i32_0, %arg2 : i32, i32, i32
  }
  func.func @transform_2(%arg0: i32, %arg1: i32, %arg2: i32) -> (i32, i32) {
    %c0_i32 = arith.constant 0 : i32
    %c0_i32_0 = arith.constant 0 : i32
    %c0_i32_1 = arith.constant 0 : i32
    return %c0_i32, %c0_i32_0 : i32, i32
  }
  func.func @transform_3(%arg0: i32, %arg1: i32, %arg2: i32) -> (i32, i32, i32, i32) {
    %c0_i32 = arith.constant 0 : i32
    %c0_i32_0 = arith.constant 0 : i32
    %c0_i32_1 = arith.constant 0 : i32
    return %arg0, %arg1, %c0_i32, %c0_i32_0 : i32, i32, i32, i32
  }
}

</mosaic_0001>

<llo_original>
// kernel: fcn_head_forward.1
$region0: #{fcn_head_forward.1}
  #allocation0 [shape = 'u32[]', space=smem, size = 0x4, offset = 0x4, fixed_abs, tag = 'smem constant byte address 0x4 - core index']
  #allocation1 [shape = 'u32[144,128]{1,0:T(1,128)}', space=vmem, size = 0x12000, scoped, tag = 'internal scratch']
  #allocation2 [shape = 'f32[8,256]{1,0:T(8,128)}', space=vmem, size = 0x2000, scoped, tag = 'scratch operand']
  %s0 = inlined_call_operand.vmem [shape: bf16[2,2,8,256], index: 0, kind: input, shape index: {}]
  %s1 = inlined_call_operand.vmem [shape: bf16[9,8,8], index: 1, kind: input, shape index: {}]
  %s2 = inlined_call_operand.vmem [shape: f32[8,1], index: 2, kind: input, shape index: {}]
  %s3 = inlined_call_operand.vmem [shape: f32[2,2,8,256], index: 3, kind: output, shape index: {}]
  %s4 = sld [smem:[#allocation0]]
  $region53: #{fcn_head_forward.1} parent=0
    _
  %s6 = ssub.s32 1, %s4
  %s7 = scalar_select 0, %s6, %s4
  loop: start=0, step=1, limit=6
  $region2: #{fcn_head_forward.1} parent=0 // loop_pre_header
    _
  $region3: #{fcn_head_forward.1} parent=0 // loop_header
    %s9 = sphi 0, %s13
    %p10 = scmp.ge.s32.totalorder %s9, 6
    %s16 = sphi 0, %s35
    %s17 = sphi 0, %s31
    %s18 = sphi 0, %s27
    %s19 = sphi 0, %s16
    %s20 = sphi 0, %s17
    %s21 = sphi 0, %s18
    %s22 = sphi 0, %s19
    %s23 = sphi 0, %s20
    %s24 = sphi 0, %s21
    %s42 = sphi 0, %s44
    %s45 = sphi 0, %s42
    %s46 = sphi 0, %s45
    %s62 = sphi 0, %s46
    %s68 = sphi 0, %s70
    %s71 = sphi 0, %s68
    %s72 = sphi 0, %s71
    %s88 = sphi 0, %s72
    %s92 = sphi 0, %s92
    %s94 = sphi 0, %s92
    %s95 = sphi 0, %s94
    %s109 = sphi 0, %s95
    %s117 = sphi 0, %s119
    %s120 = sphi 0, %s117
    %s121 = sphi 0, %s120
    %s137 = sphi 0, %s121
  $region4: #{fcn_head_forward.1} parent=0 // loop_header_branch
    %12 = sbr.rel (%p10) target = $region8
  $region5: #{fcn_head_forward.1} parent=0 // loop_body
    %s14 = ssub.s32 %s9, 1
    %s15 = ssub.s32 %s9, 2
    %s25 = sadd.s32 1, %s18
    %p26 = scmp.ge.s32.totalorder %s25, 1
    %s27 = scalar_select %p26, 0, %s25
    %s28 = sadd.s32 1, %s17
    %s29 = scalar_select %p26, %s28, %s17
    %p30 = scmp.ge.s32.totalorder %s29, 2
    %s31 = scalar_select %p30, 0, %s29
    %s32 = sadd.s32 1, %s16
    %s33 = scalar_select %p30, %s32, %s16
    %p34 = scmp.ge.s32.totalorder %s33, 2
    %s35 = scalar_select %p34, 0, %s33
    %s36 = ssub.s32 %s16, %s35
    %s37 = ssub.s32 %s17, %s31
    %s38 = sor.u32 %s36, %s37
    %s39 = ssub.s32 %s18, %s27
    %s40 = sor.u32 %s38, %s39
    %p41 = scmp.eq.s32.totalorder %s40, 0
    %s43 = sadd.s32 %s42, 1
    %s44 = scalar_select %p41, %s42, %s43
    %p47 = pneg %p41
    %p48 = scmp.eq.s32.totalorder %s9, 3
    %p49 = por %p47, %p48
    %p50 = scmp.ne.s32.totalorder %s42, %s45
    %p51 = scmp.eq.s32.totalorder %s9, 0
    %p52 = por %p50, %p51
    %p53 = scmp.ne.s32.totalorder %s42, %s45
    %p54 = scmp.eq.s32.totalorder %s14, 3
    %p55 = por %p53, %p54
    %p56 = scmp.ne.s32.totalorder %s45, %s46
    %p57 = scmp.eq.s32.totalorder %s14, 0
    %p58 = por %p56, %p57
    %p59 = scmp.ne.s32.totalorder %s45, %s46
    %p60 = scmp.eq.s32.totalorder %s15, 3
    %p61 = por %p59, %p60
    %p63 = scmp.ne.s32.totalorder %s46, %s62
    %p64 = scmp.eq.s32.totalorder %s15, 0
    %p65 = por %p63, %p64
    %s66 = ssub.s32 %s18, %s27
    %p67 = scmp.eq.s32.totalorder %s66, 0
    %s69 = sadd.s32 %s68, 1
    %s70 = scalar_select %p67, %s68, %s69
    %p73 = pneg %p67
    %p74 = scmp.eq.s32.totalorder %s9, 3
    %p75 = por %p73, %p74
    %p76 = scmp.ne.s32.totalorder %s68, %s71
    %p77 = scmp.eq.s32.totalorder %s9, 0
    %p78 = por %p76, %p77
    %p79 = scmp.ne.s32.totalorder %s68, %s71
    %p80 = scmp.eq.s32.totalorder %s14, 3
    %p81 = por %p79, %p80
    %p82 = scmp.ne.s32.totalorder %s71, %s72
    %p83 = scmp.eq.s32.totalorder %s14, 0
    %p84 = por %p82, %p83
    %p85 = scmp.ne.s32.totalorder %s71, %s72
    %p86 = scmp.eq.s32.totalorder %s15, 3
    %p87 = por %p85, %p86
    %p89 = scmp.ne.s32.totalorder %s72, %s88
    %p90 = scmp.eq.s32.totalorder %s15, 0
    %p91 = por %p89, %p90
    %s93 = sadd.s32 %s92, 1
    %p96 = scmp.eq.s32.totalorder %s9, 3
    %p97 = scmp.ne.s32.totalorder %s92, %s94
    %p98 = scmp.eq.s32.totalorder %s9, 0
    %p99 = por %p97, %p98
    %p100 = scmp.ne.s32.totalorder %s92, %s94
    %p101 = scmp.eq.s32.totalorder %s14, 3
    %p102 = por %p100, %p101
    %p103 = scmp.ne.s32.totalorder %s94, %s95
    %p104 = scmp.eq.s32.totalorder %s14, 0
    %p105 = por %p103, %p104
    %p106 = scmp.ne.s32.totalorder %s94, %s95
    %p107 = scmp.eq.s32.totalorder %s15, 3
    %p108 = por %p106, %p107
    %p110 = scmp.ne.s32.totalorder %s95, %s109
    %p111 = scmp.eq.s32.totalorder %s15, 0
    %p112 = por %p110, %p111
    %s113 = ssub.s32 %s16, %s35
    %s114 = ssub.s32 %s17, %s31
    %s115 = sor.u32 %s113, %s114
    %p116 = scmp.eq.s32.totalorder %s115, 0
    %s118 = sadd.s32 %s117, 1
    %s119 = scalar_select %p116, %s117, %s118
    %p122 = pneg %p116
    %p123 = scmp.eq.s32.totalorder %s9, 3
    %p124 = por %p122, %p123
    %p125 = scmp.ne.s32.totalorder %s117, %s120
    %p126 = scmp.eq.s32.totalorder %s9, 0
    %p127 = por %p125, %p126
    %p128 = scmp.ne.s32.totalorder %s117, %s120
    %p129 = scmp.eq.s32.totalorder %s14, 3
    %p130 = por %p128, %p129
    %p131 = scmp.ne.s32.totalorder %s120, %s121
    %p132 = scmp.eq.s32.totalorder %s14, 0
    %p133 = por %p131, %p132
    %p134 = scmp.ne.s32.totalorder %s120, %s121
    %p135 = scmp.eq.s32.totalorder %s15, 3
    %p136 = por %p134, %p135
    %p138 = scmp.ne.s32.totalorder %s121, %s137
    %p139 = scmp.eq.s32.totalorder %s15, 0
    %p140 = por %p138, %p139
    %p141 = scmp.le.s32.totalorder 1, %s9
    %p142 = scmp.lt.s32.totalorder %s9, 5
    %p143 = pnand %p141, %p142
    %p144 = pneg %p143
    // Predicated region
    $region9: #{fcn_head_forward.1} parent=5 // pred_check
      _
    $region10: #{fcn_head_forward.1} parent=5 // pred_check_branch
      %146 = sbr.rel (%p143) target = $region12
    $region11: #{fcn_head_forward.1} parent=5 // pred_region
      %s147 = ssub.s32 %s9, 1
      // Predicated region
      $region13: #{fcn_head_forward.1} parent=11 // pred_check
        %p148 = pneg %p84
      $region14: #{fcn_head_forward.1} parent=11 // pred_check_branch
        %150 = sbr.rel (%p148) target = $region16
      $region15: #{fcn_head_forward.1} parent=11 // pred_region
        %p151 = scmp.lt.s32.totalorder %s21, 0
        %s152 = scalar_select %p151, %s21, 0
        %s153 = smul.addr %s152, 4
        %s154 = scalar_lea.vmem %s1, %s153
      $region16: #{fcn_head_forward.1} parent=11 // pred_fallthru
        _
      // Predicated region
      $region17: #{fcn_head_forward.1} parent=11 // pred_check
        %p155 = pneg %p105
      $region18: #{fcn_head_forward.1} parent=11 // pred_check_branch
        %157 = sbr.rel (%p155) target = $region20
      $region19: #{fcn_head_forward.1} parent=11 // pred_region
        _
      $region20: #{fcn_head_forward.1} parent=11 // pred_fallthru
        _
    $region12: #{fcn_head_forward.1} parent=5 // pred_fallthru
      _
    %p158 = scmp.lt.s32.totalorder %s9, 4
    // Predicated region
    $region21: #{fcn_head_forward.1} parent=5 // pred_check
      %p159 = pneg %p158
    $region22: #{fcn_head_forward.1} parent=5 // pred_check_branch
      %161 = sbr.rel (%p159) target = $region24
    $region23: #{fcn_head_forward.1} parent=5 // pred_region
      // Predicated region
      $region25: #{fcn_head_forward.1} parent=23 // pred_check
        %p162 = pneg %p52
      $region26: #{fcn_head_forward.1} parent=23 // pred_check_branch
        %164 = sbr.rel (%p162) target = $region28
      $region27: #{fcn_head_forward.1} parent=23 // pred_region
        %p165 = scmp.lt.s32.totalorder %s16, 1
        %s166 = scalar_select %p165, %s16, 1
        %p167 = scmp.lt.s32.totalorder %s17, 1
        %s168 = scalar_select %p167, %s17, 1
        %p169 = scmp.lt.s32.totalorder %s18, 0
        %s170 = scalar_select %p169, %s18, 0
        %s171 = smul.addr %s170, 2
        %s172 = smul.addr %s168, 2
        %s173 = sadd.s32 %s171, %s172
        %s174 = smul.addr %s166, 4
        %s175 = sadd.s32 %s173, %s174
        %s176 = smul.addr %s175, 4
        %s177 = scalar_lea.vmem %s0, %s176
      $region28: #{fcn_head_forward.1} parent=23 // pred_fallthru
        _
    $region24: #{fcn_head_forward.1} parent=5 // pred_fallthru
      _
    %p178 = scmp.le.s32.totalorder 1, %s9
    %p179 = scmp.lt.s32.totalorder %s9, 5
    %p180 = pnand %p178, %p179
    %p181 = pneg %p180
    // Predicated region
    $region29: #{fcn_head_forward.1} parent=5 // pred_check
      _
    $region30: #{fcn_head_forward.1} parent=5 // pred_check_branch
      %183 = sbr.rel (%p180) target = $region32
    $region31: #{fcn_head_forward.1} parent=5 // pred_region
      %s184 = ssub.s32 %s9, 1
      %p185 = scmp.lt.s32.totalorder %s19, 1
      %s186 = scalar_select %p185, %s19, 1
      %p187 = scmp.lt.s32.totalorder %s20, 1
      %s188 = scalar_select %p187, %s20, 1
      %p189 = scmp.lt.s32.totalorder %s21, 0
      %s190 = scalar_select %p189, %s21, 0
      %s191 = smul.addr %s190, 2
      %s192 = smul.addr %s188, 2
      %s193 = sadd.s32 %s191, %s192
      %s194 = smul.addr %s186, 4
      %s195 = sadd.s32 %s193, %s194
      %s196 = smul.addr %s195, 4
      %s197 = scalar_lea.vmem %s0, %s196
      %p198 = pneg %p58
      %p199 = pneg %p55
      %p200 = scmp.lt.s32.totalorder %s21, 0
      %s201 = scalar_select %p200, %s21, 0
      %s202 = smul.addr %s201, 4
      %s203 = scalar_lea.vmem %s1, %s202
      %p204 = pneg %p84
      %p205 = pneg %p81
      %p206 = pneg %p105
      %p207 = pneg %p102
      %p208 = pneg %p133
      %p209 = pneg %p130
      %p210 = scmp.lt.s32.totalorder %s19, 1
      %s211 = scalar_select %p210, %s19, 1
      %p212 = scmp.lt.s32.totalorder %s20, 1
      %s213 = scalar_select %p212, %s20, 1
      %s214 = smul.addr %s213, 2
      %s215 = smul.addr %s211, 4
      %s216 = sadd.s32 %s214, %s215
      %s217 = smul.addr %s216, 8
      %s218 = scalar_lea.vmem %s3, %s217
      %p219 = scmp.lt.s32.totalorder %s19, 1
      %s220 = scalar_select %p219, %s19, 1
      %p221 = scmp.lt.s32.totalorder %s20, 1
      %s222 = scalar_select %p221, %s20, 1
      %p223 = scmp.lt.s32.totalorder %s21, 0
      %s224 = scalar_select %p223, %s21, 0
      %s225 = smul.addr %s224, 2
      %s226 = smul.addr %s222, 2
      %s227 = sadd.s32 %s225, %s226
      %s228 = smul.addr %s220, 4
      %s229 = sadd.s32 %s227, %s228
      %s230 = smul.addr %s229, 4
      %s231 = scalar_lea.vmem %s0, %s230
      %p232 = scmp.lt.s32.totalorder %s21, 0
      %s233 = scalar_select %p232, %s21, 0
      %s234 = smul.addr %s233, 4
      %s235 = scalar_lea.vmem %s1, %s234
      %p236 = scmp.lt.s32.totalorder %s19, 1
      %s237 = scalar_select %p236, %s19, 1
      %p238 = scmp.lt.s32.totalorder %s20, 1
      %s239 = scalar_select %p238, %s20, 1
      %s240 = smul.addr %s239, 2
      %s241 = smul.addr %s237, 4
      %s242 = sadd.s32 %s240, %s241
      %s243 = smul.addr %s242, 8
      %s244 = scalar_lea.vmem %s3, %s243
      %p246 = scmp.eq.s32.totalorder %s21, 0
      // Predicated region
      $region33: #{fcn_head_forward.1} parent=31 // pred_check
        %p247 = pneg %p246
      $region34: #{fcn_head_forward.1} parent=31 // pred_check_branch
        %249 = sbr.rel (%p247) target = $region36
      $region35: #{fcn_head_forward.1} parent=31 // pred_region
        %250 = vst [vmem:[#allocation2] sm:$0xff] 0.0
        %251 = vst [vmem:[#allocation2 + $0x8] sm:$0xff] 0.0
      $region36: #{fcn_head_forward.1} parent=31 // pred_fallthru
        _
      %v252 = vld [vmem:[%s231] sm:$0xff]
      %v253 = vld [vmem:[%s235] sm:$0xf]
      %v255 = vunpack.c.l.b16 %v252
      %v256 = vunpack.c.h.b16 %v252
      %v257 = vpack.c.b16 %v255, %v255
      %v258 = vpack.c.b16 %v256, %v256
      %vm259 = vcmask 64512
      %v261 = vsel %vm259, %v253, 0
      %vm263 = vcmask 1043456
      %v265 = vsel %vm263, %v257, 0
      %v268 = vsel %vm263, %v258, 0
      %270 = vmatprep.subr.bf16.mxu0 0
      %271 = vmatpush1.bf16.msra.mxu0 0
      %272 = vmatprep.subr.bf16.mxu0 0
      %273 = vmatpush1.bf16.msra.mxu0 0
      %274 = vmatprep.subr.bf16.mxu0 0
      %275 = vmatpush1.bf16.msra.mxu0 0
      %276 = vmatprep.subr.bf16.mxu0 0
      %277 = vmatpush1.bf16.msra.mxu0 0
      %278 = vmatprep.subr.bf16.mxu0 0
      %279 = vmatpush1.bf16.msra.mxu0 0
      %280 = vmatprep.subr.bf16.mxu0 0
      %281 = vmatpush1.bf16.msra.mxu0 0
      %282 = vmatprep.subr.bf16.mxu0 0
      %283 = vmatpush1.bf16.msra.mxu0 0
      %284 = vmatprep.subr.bf16.mxu0 %v268
      %285 = vmatpush1.bf16.msra.mxu0 %v265
      %286 = vmatprep.subr.bf16.mxu0 0
      %287 = vmatpush2.bf16.msra.mxu0 0
      %288 = vmatprep.subr.bf16.mxu0 0
      %289 = vmatpush2.bf16.msra.mxu0 0
      %290 = vmatprep.subr.bf16.mxu0 0
      %291 = vmatpush2.bf16.msra.mxu0 0
      %292 = vmatprep.subr.bf16.mxu0 0
      %293 = vmatpush2.bf16.msra.mxu0 0
      %294 = vmatprep.subr.bf16.mxu0 0
      %295 = vmatpush2.bf16.msra.mxu0 0
      %296 = vmatprep.subr.bf16.mxu0 0
      %297 = vmatpush2.bf16.msra.mxu0 0
      %298 = vmatprep.subr.bf16.mxu0 0
      %299 = vmatpush2.bf16.msra.mxu0 0
      %300 = vmatprep.subr.bf16.mxu0 0
      %301 = vmatpush2.bf16.msra.mxu0 0
      %302 = vmatprep.mubr.bf16.mxu0 0
      %303 = vmatmul.mubr.bf16.gmra.mxu0 %v261
      %v304 = vpop.f32.mrf.mxu0
      %v305 = vadd.f32 0.0, %v304
      %v306 = vpop.f32.mrf.mxu0
      %v307 = vadd.f32 0.0, %v306
      %v308 = vpop.f32.mrf.mxu0
      %v309 = vpop.f32.mrf.mxu0
      %310 = vdwg.mxu0
      %v311 = vld [vmem:[#allocation2] sm:$0xff]
      %v312 = vld [vmem:[#allocation2 + $0x8] sm:$0xff]
      %v313 = vadd.f32 %v311, %v305
      %v314 = vadd.f32 %v312, %v307
      %315 = vst [vmem:[#allocation2] sm:$0xff] %v313
      %316 = vst [vmem:[#allocation2 + $0x8] sm:$0xff] %v314
      %s317 = scalar_lea.vmem %s235, 4
      %v318 = vld [vmem:[%s317] sm:$0xf]
      %v320 = vsel %vm259, %v318, 0
      %322 = vmatprep.subr.bf16.mxu0 0
      %323 = vmatpush1.bf16.msra.mxu0 0
      %324 = vmatprep.subr.bf16.mxu0 0
      %325 = vmatpush1.bf16.msra.mxu0 0
      %326 = vmatprep.subr.bf16.mxu0 0
      %327 = vmatpush1.bf16.msra.mxu0 0
      %328 = vmatprep.subr.bf16.mxu0 0
      %329 = vmatpush1.bf16.msra.mxu0 0
      %330 = vmatprep.subr.bf16.mxu0 0
      %331 = vmatpush1.bf16.msra.mxu0 0
      %332 = vmatprep.subr.bf16.mxu0 0
      %333 = vmatpush1.bf16.msra.mxu0 0
      %334 = vmatprep.subr.bf16.mxu0 0
      %335 = vmatpush1.bf16.msra.mxu0 0
      %336 = vmatprep.subr.bf16.mxu0 %v268
      %337 = vmatpush1.bf16.msra.mxu0 %v265
      %338 = vmatprep.subr.bf16.mxu0 0
      %339 = vmatpush2.bf16.msra.mxu0 0
      %340 = vmatprep.subr.bf16.mxu0 0
      %341 = vmatpush2.bf16.msra.mxu0 0
      %342 = vmatprep.subr.bf16.mxu0 0
      %343 = vmatpush2.bf16.msra.mxu0 0
      %344 = vmatprep.subr.bf16.mxu0 0
      %345 = vmatpush2.bf16.msra.mxu0 0
      %346 = vmatprep.subr.bf16.mxu0 0
      %347 = vmatpush2.bf16.msra.mxu0 0
      %348 = vmatprep.subr.bf16.mxu0 0
      %349 = vmatpush2.bf16.msra.mxu0 0
      %350 = vmatprep.subr.bf16.mxu0 0
      %351 = vmatpush2.bf16.msra.mxu0 0
      %352 = vmatprep.subr.bf16.mxu0 0
      %353 = vmatpush2.bf16.msra.mxu0 0
      %354 = vmatprep.mubr.bf16.mxu0 0
      %355 = vmatmul.mubr.bf16.gmra.mxu0 %v320
      %v356 = vpop.f32.mrf.mxu0
      %v357 = vadd.f32 0.0, %v356
      %v358 = vpop.f32.mrf.mxu0
      %v359 = vadd.f32 0.0, %v358
      %v360 = vpop.f32.mrf.mxu0
      %v361 = vpop.f32.mrf.mxu0
      %362 = vdwg.mxu0
      %365 = vrot.lane.b32.xlu0 %v357, 127
      %v366 = vpop.permute.xlu0 %365
      %367 = vrot.lane.b32.xlu0 %v359, 127
      %v368 = vpop.permute.xlu0 %367
      %vm369 = vcmask 1039360
      %v370 = vsel %vm369, %v366, %v368
      %v374 = vsel %vm369, %v368, %v366
      %v375 = vld [vmem:[#allocation2] sm:$0xff]
      %v376 = vld [vmem:[#allocation2 + $0x8] sm:$0xff]
      %v377 = vadd.f32 %v375, %v370
      %v378 = vadd.f32 %v376, %v374
      %379 = vst [vmem:[#allocation2] sm:$0xff] %v377
      %380 = vst [vmem:[#allocation2 + $0x8] sm:$0xff] %v378
      %s381 = scalar_lea.vmem %s235, 8
      %v382 = vld [vmem:[%s381] sm:$0xf]
      %v384 = vsel %vm259, %v382, 0
      %386 = vmatprep.subr.bf16.mxu0 0
      %387 = vmatpush1.bf16.msra.mxu0 0
      %388 = vmatprep.subr.bf16.mxu0 0
      %389 = vmatpush1.bf16.msra.mxu0 0
      %390 = vmatprep.subr.bf16.mxu0 0
      %391 = vmatpush1.bf16.msra.mxu0 0
      %392 = vmatprep.subr.bf16.mxu0 0
      %393 = vmatpush1.bf16.msra.mxu0 0
      %394 = vmatprep.subr.bf16.mxu0 0
      %395 = vmatpush1.bf16.msra.mxu0 0
      %396 = vmatprep.subr.bf16.mxu0 0
      %397 = vmatpush1.bf16.msra.mxu0 0
      %398 = vmatprep.subr.bf16.mxu0 0
      %399 = vmatpush1.bf16.msra.mxu0 0
      %400 = vmatprep.subr.bf16.mxu0 %v268
      %401 = vmatpush1.bf16.msra.mxu0 %v265
      %402 = vmatprep.subr.bf16.mxu0 0
      %403 = vmatpush2.bf16.msra.mxu0 0
      %404 = vmatprep.subr.bf16.mxu0 0
      %405 = vmatpush2.bf16.msra.mxu0 0
      %406 = vmatprep.subr.bf16.mxu0 0
      %407 = vmatpush2.bf16.msra.mxu0 0
      %408 = vmatprep.subr.bf16.mxu0 0
      %409 = vmatpush2.bf16.msra.mxu0 0
      %410 = vmatprep.subr.bf16.mxu0 0
      %411 = vmatpush2.bf16.msra.mxu0 0
      %412 = vmatprep.subr.bf16.mxu0 0
      %413 = vmatpush2.bf16.msra.mxu0 0
      %414 = vmatprep.subr.bf16.mxu0 0
      %415 = vmatpush2.bf16.msra.mxu0 0
      %416 = vmatprep.subr.bf16.mxu0 0
      %417 = vmatpush2.bf16.msra.mxu0 0
      %418 = vmatprep.mubr.bf16.mxu0 0
      %419 = vmatmul.mubr.bf16.gmra.mxu0 %v384
      %v420 = vpop.f32.mrf.mxu0
      %v421 = vadd.f32 0.0, %v420
      %v422 = vpop.f32.mrf.mxu0
      %v423 = vadd.f32 0.0, %v422
      %v424 = vpop.f32.mrf.mxu0
      %v425 = vpop.f32.mrf.mxu0
      %426 = vdwg.mxu0
      %429 = vrot.lane.b32.xlu0 %v421, 126
      %v430 = vpop.permute.xlu0 %429
      %431 = vrot.lane.b32.xlu0 %v423, 126
      %v432 = vpop.permute.xlu0 %431
      %vm433 = vcmask 1031168
      %v434 = vsel %vm433, %v430, %v432
      %v438 = vsel %vm433, %v432, %v430
      %v439 = vld [vmem:[#allocation2] sm:$0xff]
      %v440 = vld [vmem:[#allocation2 + $0x8] sm:$0xff]
      %v441 = vadd.f32 %v439, %v434
      %v442 = vadd.f32 %v440, %v438
      %443 = vst [vmem:[#allocation2] sm:$0xff] %v441
      %444 = vst [vmem:[#allocation2 + $0x8] sm:$0xff] %v442
      %s445 = scalar_lea.vmem %s235, 12
      %v446 = vld [vmem:[%s445] sm:$0xf]
      %v448 = vsel %vm259, %v446, 0
      %450 = vmatprep.subr.bf16.mxu0 0
      %451 = vmatpush1.bf16.msra.mxu0 0
      %452 = vmatprep.subr.bf16.mxu0 0
      %453 = vmatpush1.bf16.msra.mxu0 0
      %454 = vmatprep.subr.bf16.mxu0 0
      %455 = vmatpush1.bf16.msra.mxu0 0
      %456 = vmatprep.subr.bf16.mxu0 0
      %457 = vmatpush1.bf16.msra.mxu0 0
      %458 = vmatprep.subr.bf16.mxu0 0
      %459 = vmatpush1.bf16.msra.mxu0 0
      %460 = vmatprep.subr.bf16.mxu0 0
      %461 = vmatpush1.bf16.msra.mxu0 0
      %462 = vmatprep.subr.bf16.mxu0 0
      %463 = vmatpush1.bf16.msra.mxu0 0
      %464 = vmatprep.subr.bf16.mxu0 %v268
      %465 = vmatpush1.bf16.msra.mxu0 %v265
      %466 = vmatprep.subr.bf16.mxu0 0
      %467 = vmatpush2.bf16.msra.mxu0 0
      %468 = vmatprep.subr.bf16.mxu0 0
      %469 = vmatpush2.bf16.msra.mxu0 0
      %470 = vmatprep.subr.bf16.mxu0 0
      %471 = vmatpush2.bf16.msra.mxu0 0
      %472 = vmatprep.subr.bf16.mxu0 0
      %473 = vmatpush2.bf16.msra.mxu0 0
      %474 = vmatprep.subr.bf16.mxu0 0
      %475 = vmatpush2.bf16.msra.mxu0 0
      %476 = vmatprep.subr.bf16.mxu0 0
      %477 = vmatpush2.bf16.msra.mxu0 0
      %478 = vmatprep.subr.bf16.mxu0 0
      %479 = vmatpush2.bf16.msra.mxu0 0
      %480 = vmatprep.subr.bf16.mxu0 0
      %481 = vmatpush2.bf16.msra.mxu0 0
      %482 = vmatprep.mubr.bf16.mxu0 0
      %483 = vmatmul.mubr.bf16.gmra.mxu0 %v448
      %v484 = vpop.f32.mrf.mxu0
      %v485 = vadd.f32 0.0, %v484
      %v486 = vpop.f32.mrf.mxu0
      %v487 = vadd.f32 0.0, %v486
      %v488 = vpop.f32.mrf.mxu0
      %v489 = vpop.f32.mrf.mxu0
      %490 = vdwg.mxu0
      %493 = vrot.lane.b32.xlu0 %v485, 110
      %v494 = vpop.permute.xlu0 %493
      %495 = vrot.lane.b32.xlu0 %v487, 110
      %v496 = vpop.permute.xlu0 %495
      %vm497 = vcmask 900096
      %v498 = vsel %vm497, %v494, %v496
      %v502 = vsel %vm497, %v496, %v494
      %v503 = vld [vmem:[#allocation2] sm:$0xff]
      %v504 = vld [vmem:[#allocation2 + $0x8] sm:$0xff]
      %v505 = vadd.f32 %v503, %v498
      %v506 = vadd.f32 %v504, %v502
      %507 = vst [vmem:[#allocation2] sm:$0xff] %v505
      %508 = vst [vmem:[#allocation2 + $0x8] sm:$0xff] %v506
      %s509 = scalar_lea.vmem %s235, 16
      %v510 = vld [vmem:[%s509] sm:$0xf]
      %v512 = vsel %vm259, %v510, 0
      %514 = vmatprep.subr.bf16.mxu0 0
      %515 = vmatpush1.bf16.msra.mxu0 0
      %516 = vmatprep.subr.bf16.mxu0 0
      %517 = vmatpush1.bf16.msra.mxu0 0
      %518 = vmatprep.subr.bf16.mxu0 0
      %519 = vmatpush1.bf16.msra.mxu0 0
      %520 = vmatprep.subr.bf16.mxu0 0
      %521 = vmatpush1.bf16.msra.mxu0 0
      %522 = vmatprep.subr.bf16.mxu0 0
      %523 = vmatpush1.bf16.msra.mxu0 0
      %524 = vmatprep.subr.bf16.mxu0 0
      %525 = vmatpush1.bf16.msra.mxu0 0
      %526 = vmatprep.subr.bf16.mxu0 0
      %527 = vmatpush1.bf16.msra.mxu0 0
      %528 = vmatprep.subr.bf16.mxu0 %v268
      %529 = vmatpush1.bf16.msra.mxu0 %v265
      %530 = vmatprep.subr.bf16.mxu0 0
      %531 = vmatpush2.bf16.msra.mxu0 0
      %532 = vmatprep.subr.bf16.mxu0 0
      %533 = vmatpush2.bf16.msra.mxu0 0
      %534 = vmatprep.subr.bf16.mxu0 0
      %535 = vmatpush2.bf16.msra.mxu0 0
      %536 = vmatprep.subr.bf16.mxu0 0
      %537 = vmatpush2.bf16.msra.mxu0 0
      %538 = vmatprep.subr.bf16.mxu0 0
      %539 = vmatpush2.bf16.msra.mxu0 0
      %540 = vmatprep.subr.bf16.mxu0 0
      %541 = vmatpush2.bf16.msra.mxu0 0
      %542 = vmatprep.subr.bf16.mxu0 0
      %543 = vmatpush2.bf16.msra.mxu0 0
      %544 = vmatprep.subr.bf16.mxu0 0
      %545 = vmatpush2.bf16.msra.mxu0 0
      %546 = vmatprep.mubr.bf16.mxu0 0
      %547 = vmatmul.mubr.bf16.gmra.mxu0 %v512
      %v548 = vpop.f32.mrf.mxu0
      %v549 = vadd.f32 0.0, %v548
      %v550 = vpop.f32.mrf.mxu0
      %v551 = vadd.f32 0.0, %v550
      %v552 = vpop.f32.mrf.mxu0
      %v553 = vpop.f32.mrf.mxu0
      %554 = vdwg.mxu0
      %557 = vrot.lane.b32.xlu0 %v549, 109
      %v558 = vpop.permute.xlu0 %557
      %559 = vrot.lane.b32.xlu0 %v551, 109
      %v560 = vpop.permute.xlu0 %559
      %vm561 = vcmask 891904
      %v562 = vsel %vm561, %v558, %v560
      %v566 = vsel %vm561, %v560, %v558
      %v567 = vld [vmem:[#allocation2] sm:$0xff]
      %v568 = vld [vmem:[#allocation2 + $0x8] sm:$0xff]
      %v569 = vadd.f32 %v567, %v562
      %v570 = vadd.f32 %v568, %v566
      %571 = vst [vmem:[#allocation2] sm:$0xff] %v569
      %572 = vst [vmem:[#allocation2 + $0x8] sm:$0xff] %v570
      %s573 = scalar_lea.vmem %s235, 20
      %v574 = vld [vmem:[%s573] sm:$0xf]
      %v576 = vsel %vm259, %v574, 0
      %578 = vmatprep.subr.bf16.mxu0 0
      %579 = vmatpush1.bf16.msra.mxu0 0
      %580 = vmatprep.subr.bf16.mxu0 0
      %581 = vmatpush1.bf16.msra.mxu0 0
      %582 = vmatprep.subr.bf16.mxu0 0
      %583 = vmatpush1.bf16.msra.mxu0 0
      %584 = vmatprep.subr.bf16.mxu0 0
      %585 = vmatpush1.bf16.msra.mxu0 0
      %586 = vmatprep.subr.bf16.mxu0 0
      %587 = vmatpush1.bf16.msra.mxu0 0
      %588 = vmatprep.subr.bf16.mxu0 0
      %589 = vmatpush1.bf16.msra.mxu0 0
      %590 = vmatprep.subr.bf16.mxu0 0
      %591 = vmatpush1.bf16.msra.mxu0 0
      %592 = vmatprep.subr.bf16.mxu0 %v268
      %593 = vmatpush1.bf16.msra.mxu0 %v265
      %594 = vmatprep.subr.bf16.mxu0 0
      %595 = vmatpush2.bf16.msra.mxu0 0
      %596 = vmatprep.subr.bf16.mxu0 0
      %597 = vmatpush2.bf16.msra.mxu0 0
      %598 = vmatprep.subr.bf16.mxu0 0
      %599 = vmatpush2.bf16.msra.mxu0 0
      %600 = vmatprep.subr.bf16.mxu0 0
      %601 = vmatpush2.bf16.msra.mxu0 0
      %602 = vmatprep.subr.bf16.mxu0 0
      %603 = vmatpush2.bf16.msra.mxu0 0
      %604 = vmatprep.subr.bf16.mxu0 0
      %605 = vmatpush2.bf16.msra.mxu0 0
      %606 = vmatprep.subr.bf16.mxu0 0
      %607 = vmatpush2.bf16.msra.mxu0 0
      %608 = vmatprep.subr.bf16.mxu0 0
      %609 = vmatpush2.bf16.msra.mxu0 0
      %610 = vmatprep.mubr.bf16.mxu0 0
      %611 = vmatmul.mubr.bf16.gmra.mxu0 %v576
      %v612 = vpop.f32.mrf.mxu0
      %v613 = vadd.f32 0.0, %v612
      %v614 = vpop.f32.mrf.mxu0
      %v615 = vadd.f32 0.0, %v614
      %v616 = vpop.f32.mrf.mxu0
      %v617 = vpop.f32.mrf.mxu0
      %618 = vdwg.mxu0
      %621 = vrot.lane.b32.xlu0 %v613, 108
      %v622 = vpop.permute.xlu0 %621
      %623 = vrot.lane.b32.xlu0 %v615, 108
      %v624 = vpop.permute.xlu0 %623
      %vm625 = vcmask 883712
      %v626 = vsel %vm625, %v622, %v624
      %v630 = vsel %vm625, %v624, %v622
      %v631 = vld [vmem:[#allocation2] sm:$0xff]
      %v632 = vld [vmem:[#allocation2 + $0x8] sm:$0xff]
      %v633 = vadd.f32 %v631, %v626
      %v634 = vadd.f32 %v632, %v630
      %635 = vst [vmem:[#allocation2] sm:$0xff] %v633
      %636 = vst [vmem:[#allocation2 + $0x8] sm:$0xff] %v634
      %s637 = scalar_lea.vmem %s235, 24
      %v638 = vld [vmem:[%s637] sm:$0xf]
      %v640 = vsel %vm259, %v638, 0
      %642 = vmatprep.subr.bf16.mxu0 0
      %643 = vmatpush1.bf16.msra.mxu0 0
      %644 = vmatprep.subr.bf16.mxu0 0
      %645 = vmatpush1.bf16.msra.mxu0 0
      %646 = vmatprep.subr.bf16.mxu0 0
      %647 = vmatpush1.bf16.msra.mxu0 0
      %648 = vmatprep.subr.bf16.mxu0 0
      %649 = vmatpush1.bf16.msra.mxu0 0
      %650 = vmatprep.subr.bf16.mxu0 0
      %651 = vmatpush1.bf16.msra.mxu0 0
      %652 = vmatprep.subr.bf16.mxu0 0
      %653 = vmatpush1.bf16.msra.mxu0 0
      %654 = vmatprep.subr.bf16.mxu0 0
      %655 = vmatpush1.bf16.msra.mxu0 0
      %656 = vmatprep.subr.bf16.mxu0 %v268
      %657 = vmatpush1.bf16.msra.mxu0 %v265
      %658 = vmatprep.subr.bf16.mxu0 0
      %659 = vmatpush2.bf16.msra.mxu0 0
      %660 = vmatprep.subr.bf16.mxu0 0
      %661 = vmatpush2.bf16.msra.mxu0 0
      %662 = vmatprep.subr.bf16.mxu0 0
      %663 = vmatpush2.bf16.msra.mxu0 0
      %664 = vmatprep.subr.bf16.mxu0 0
      %665 = vmatpush2.bf16.msra.mxu0 0
      %666 = vmatprep.subr.bf16.mxu0 0
      %667 = vmatpush2.bf16.msra.mxu0 0
      %668 = vmatprep.subr.bf16.mxu0 0
      %669 = vmatpush2.bf16.msra.mxu0 0
      %670 = vmatprep.subr.bf16.mxu0 0
      %671 = vmatpush2.bf16.msra.mxu0 0
      %672 = vmatprep.subr.bf16.mxu0 0
      %673 = vmatpush2.bf16.msra.mxu0 0
      %674 = vmatprep.mubr.bf16.mxu0 0
      %675 = vmatmul.mubr.bf16.gmra.mxu0 %v640
      %v676 = vpop.f32.mrf.mxu0
      %v677 = vadd.f32 0.0, %v676
      %v678 = vpop.f32.mrf.mxu0
      %v679 = vadd.f32 0.0, %v678
      %v680 = vpop.f32.mrf.mxu0
      %v681 = vpop.f32.mrf.mxu0
      %682 = vdwg.mxu0
      %685 = vrot.lane.b32.xlu0 %v677, 92
      %v686 = vpop.permute.xlu0 %685
      %687 = vrot.lane.b32.xlu0 %v679, 92
      %v688 = vpop.permute.xlu0 %687
      %vm689 = vcmask 752640
      %v690 = vsel %vm689, %v686, %v688
      %v694 = vsel %vm689, %v688, %v686
      %v695 = vld [vmem:[#allocation2] sm:$0xff]
      %v696 = vld [vmem:[#allocation2 + $0x8] sm:$0xff]
      %v697 = vadd.f32 %v695, %v690
      %v698 = vadd.f32 %v696, %v694
      %699 = vst [vmem:[#allocation2] sm:$0xff] %v697
      %700 = vst [vmem:[#allocation2 + $0x8] sm:$0xff] %v698
      %s701 = scalar_lea.vmem %s235, 28
      %v702 = vld [vmem:[%s701] sm:$0xf]
      %v704 = vsel %vm259, %v702, 0
      %706 = vmatprep.subr.bf16.mxu0 0
      %707 = vmatpush1.bf16.msra.mxu0 0
      %708 = vmatprep.subr.bf16.mxu0 0
      %709 = vmatpush1.bf16.msra.mxu0 0
      %710 = vmatprep.subr.bf16.mxu0 0
      %711 = vmatpush1.bf16.msra.mxu0 0
      %712 = vmatprep.subr.bf16.mxu0 0
      %713 = vmatpush1.bf16.msra.mxu0 0
      %714 = vmatprep.subr.bf16.mxu0 0
      %715 = vmatpush1.bf16.msra.mxu0 0
      %716 = vmatprep.subr.bf16.mxu0 0
      %717 = vmatpush1.bf16.msra.mxu0 0
      %718 = vmatprep.subr.bf16.mxu0 0
      %719 = vmatpush1.bf16.msra.mxu0 0
      %720 = vmatprep.subr.bf16.mxu0 %v268
      %721 = vmatpush1.bf16.msra.mxu0 %v265
      %722 = vmatprep.subr.bf16.mxu0 0
      %723 = vmatpush2.bf16.msra.mxu0 0
      %724 = vmatprep.subr.bf16.mxu0 0
      %725 = vmatpush2.bf16.msra.mxu0 0
      %726 = vmatprep.subr.bf16.mxu0 0
      %727 = vmatpush2.bf16.msra.mxu0 0
      %728 = vmatprep.subr.bf16.mxu0 0
      %729 = vmatpush2.bf16.msra.mxu0 0
      %730 = vmatprep.subr.bf16.mxu0 0
      %731 = vmatpush2.bf16.msra.mxu0 0
      %732 = vmatprep.subr.bf16.mxu0 0
      %733 = vmatpush2.bf16.msra.mxu0 0
      %734 = vmatprep.subr.bf16.mxu0 0
      %735 = vmatpush2.bf16.msra.mxu0 0
      %736 = vmatprep.subr.bf16.mxu0 0
      %737 = vmatpush2.bf16.msra.mxu0 0
      %738 = vmatprep.mubr.bf16.mxu0 0
      %739 = vmatmul.mubr.bf16.gmra.mxu0 %v704
      %v740 = vpop.f32.mrf.mxu0
      %v741 = vadd.f32 0.0, %v740
      %v742 = vpop.f32.mrf.mxu0
      %v743 = vadd.f32 0.0, %v742
      %v744 = vpop.f32.mrf.mxu0
      %v745 = vpop.f32.mrf.mxu0
      %746 = vdwg.mxu0
      %749 = vrot.lane.b32.xlu0 %v741, 91
      %v750 = vpop.permute.xlu0 %749
      %751 = vrot.lane.b32.xlu0 %v743, 91
      %v752 = vpop.permute.xlu0 %751
      %vm753 = vcmask 744448
      %v754 = vsel %vm753, %v750, %v752
      %v758 = vsel %vm753, %v752, %v750
      %v759 = vld [vmem:[#allocation2] sm:$0xff]
      %v760 = vld [vmem:[#allocation2 + $0x8] sm:$0xff]
      %v761 = vadd.f32 %v759, %v754
      %v762 = vadd.f32 %v760, %v758
      %763 = vst [vmem:[#allocation2] sm:$0xff] %v761
      %764 = vst [vmem:[#allocation2 + $0x8] sm:$0xff] %v762
      %s765 = scalar_lea.vmem %s235, 32
      %v766 = vld [vmem:[%s765] sm:$0xf]
      %v768 = vsel %vm259, %v766, 0
      %770 = vmatprep.subr.bf16.mxu0 0
      %771 = vmatpush1.bf16.msra.mxu0 0
      %772 = vmatprep.subr.bf16.mxu0 0
      %773 = vmatpush1.bf16.msra.mxu0 0
      %774 = vmatprep.subr.bf16.mxu0 0
      %775 = vmatpush1.bf16.msra.mxu0 0
      %776 = vmatprep.subr.bf16.mxu0 0
      %777 = vmatpush1.bf16.msra.mxu0 0
      %778 = vmatprep.subr.bf16.mxu0 0
      %779 = vmatpush1.bf16.msra.mxu0 0
      %780 = vmatprep.subr.bf16.mxu0 0
      %781 = vmatpush1.bf16.msra.mxu0 0
      %782 = vmatprep.subr.bf16.mxu0 0
      %783 = vmatpush1.bf16.msra.mxu0 0
      %784 = vmatprep.subr.bf16.mxu0 %v268
      %785 = vmatpush1.bf16.msra.mxu0 %v265
      %786 = vmatprep.subr.bf16.mxu0 0
      %787 = vmatpush2.bf16.msra.mxu0 0
      %788 = vmatprep.subr.bf16.mxu0 0
      %789 = vmatpush2.bf16.msra.mxu0 0
      %790 = vmatprep.subr.bf16.mxu0 0
      %791 = vmatpush2.bf16.msra.mxu0 0
      %792 = vmatprep.subr.bf16.mxu0 0
      %793 = vmatpush2.bf16.msra.mxu0 0
      %794 = vmatprep.subr.bf16.mxu0 0
      %795 = vmatpush2.bf16.msra.mxu0 0
      %796 = vmatprep.subr.bf16.mxu0 0
      %797 = vmatpush2.bf16.msra.mxu0 0
      %798 = vmatprep.subr.bf16.mxu0 0
      %799 = vmatpush2.bf16.msra.mxu0 0
      %800 = vmatprep.subr.bf16.mxu0 0
      %801 = vmatpush2.bf16.msra.mxu0 0
      %802 = vmatprep.mubr.bf16.mxu0 0
      %803 = vmatmul.mubr.bf16.gmra.mxu0 %v768
      %v804 = vpop.f32.mrf.mxu0
      %v805 = vadd.f32 0.0, %v804
      %v806 = vpop.f32.mrf.mxu0
      %v807 = vadd.f32 0.0, %v806
      %v808 = vpop.f32.mrf.mxu0
      %v809 = vpop.f32.mrf.mxu0
      %810 = vdwg.mxu0
      %813 = vrot.lane.b32.xlu0 %v805, 90
      %v814 = vpop.permute.xlu0 %813
      %815 = vrot.lane.b32.xlu0 %v807, 90
      %v816 = vpop.permute.xlu0 %815
      %vm817 = vcmask 736256
      %v818 = vsel %vm817, %v814, %v816
      %v822 = vsel %vm817, %v816, %v814
      %v823 = vld [vmem:[#allocation2] sm:$0xff]
      %v824 = vld [vmem:[#allocation2 + $0x8] sm:$0xff]
      %v825 = vadd.f32 %v823, %v818
      %v826 = vadd.f32 %v824, %v822
      %827 = vst [vmem:[#allocation2] sm:$0xff] %v825
      %828 = vst [vmem:[#allocation2 + $0x8] sm:$0xff] %v826
      // Predicated region
      $region37: #{fcn_head_forward.1} parent=31 // pred_check
        %p829 = pneg %p246
      $region38: #{fcn_head_forward.1} parent=31 // pred_check_branch
        %831 = sbr.rel (%p829) target = $region40
      $region39: #{fcn_head_forward.1} parent=31 // pred_region
        %v832 = vld [vmem:[#allocation2] sm:$0xff]
        %v833 = vld [vmem:[#allocation2 + $0x8] sm:$0xff]
        %v834 = vld [vmem:[%s2] sm:$0xff]
        %836 = vset.pattern.permute.xlu0 0
        %837 = vperm.xlu0 %836, %v834
        %v838 = vpop.permute.xlu0 %837
        %v840 = vadd.f32 %v832, %v838
        %v841 = vadd.f32 %v833, %v838
        %842 = vst [vmem:[%s244] sm:$0xff] %v840
        %843 = vst [vmem:[%s244 + $0x8] sm:$0xff] %v841
      $region40: #{fcn_head_forward.1} parent=31 // pred_fallthru
        _
      %p844 = scmp.lt.s32.totalorder %s19, 1
      %s845 = scalar_select %p844, %s19, 1
      %p846 = scmp.lt.s32.totalorder %s20, 1
      %s847 = scalar_select %p846, %s20, 1
      %s848 = smul.addr %s847, 2
      %s849 = smul.addr %s845, 4
      %s850 = sadd.s32 %s848, %s849
      %s851 = smul.addr %s850, 8
      %s852 = scalar_lea.vmem %s3, %s851
      // Predicated region
      $region41: #{fcn_head_forward.1} parent=31 // pred_check
        %p853 = pneg %p130
      $region42: #{fcn_head_forward.1} parent=31 // pred_check_branch
        %855 = sbr.rel (%p853) target = $region44
      $region43: #{fcn_head_forward.1} parent=31 // pred_region
        _
      $region44: #{fcn_head_forward.1} parent=31 // pred_fallthru
        _
    $region32: #{fcn_head_forward.1} parent=5 // pred_fallthru
      _
    %p856 = scmp.le.s32.totalorder 2, %s9
    // Predicated region
    $region45: #{fcn_head_forward.1} parent=5 // pred_check
      %p857 = pneg %p856
    $region46: #{fcn_head_forward.1} parent=5 // pred_check_branch
      %859 = sbr.rel (%p857) target = $region48
    $region47: #{fcn_head_forward.1} parent=5 // pred_region
      %s860 = ssub.s32 %s9, 2
      // Predicated region
      $region49: #{fcn_head_forward.1} parent=47 // pred_check
        %p861 = pneg %p136
      $region50: #{fcn_head_forward.1} parent=47 // pred_check_branch
        %863 = sbr.rel (%p861) target = $region52
      $region51: #{fcn_head_forward.1} parent=47 // pred_region
        %p864 = scmp.lt.s32.totalorder %s22, 1
        %s865 = scalar_select %p864, %s22, 1
        %p866 = scmp.lt.s32.totalorder %s23, 1
        %s867 = scalar_select %p866, %s23, 1
        %s868 = smul.addr %s867, 2
        %s869 = smul.addr %s865, 4
        %s870 = sadd.s32 %s868, %s869
        %s871 = smul.addr %s870, 8
        %s872 = scalar_lea.vmem %s3, %s871
      $region52: #{fcn_head_forward.1} parent=47 // pred_fallthru
        _
    $region48: #{fcn_head_forward.1} parent=5 // pred_fallthru
      _
  $region6: #{fcn_head_forward.1} parent=0 // loop_footer
    %s13 = sadd.s32 1, %s9
  $region7: #{fcn_head_forward.1} parent=0 // loop_footer_branch
    %8 = sbr.rel target = $region3
  $region8: #{fcn_head_forward.1} parent=0 // loop_exit
    _

</llo_original>
